<compile_context>
chip_gen: v6e
topology: v6e:2x2x1
jax: 0.10.0
libtpu: 0.0.40
codegen_flags: <defaults>
</compile_context>

<pallas_src>
import jax
import jax.numpy as jnp
from jax.experimental import pallas as pl
from jax.experimental.pallas import tpu as pltpu

INPUT_SIZE = 6
HIDDEN_SIZE = 10
SEQ_LEN = 5
NUM_CLASS = 3

GATE_PAD = 128                 # each LSTM gate gets one lane-aligned 128-wide region
PACK_W = 4 * GATE_PAD          # packed gate order: i | f | o | g  (tanh gate last)

# PyTorch LSTM gate order is (i, f, g, o); map it to lane regions i|f|o|g.
GATE_REGION = (0, 1, 3, 2)

# Row layout of the small f32 parameter buffer (regions start on 8-row boundaries).
ROW_WIH = 0                    # rows  0..7  : W_ih per gate -> lanes [r*128, r*128+H)
ROW_B = 8                      # row   8     : b_ih + b_hh per gate
ROW_FCW = 16                   # rows 16..20 : fc weight (S, C) in lanes [0, C)
ROW_FCB = 24                   # row  24     : fc bias in lanes [0, C)
N_ROWS_A = 32


def _lstm_mean_fc_kernel(x_ref, pa_ref, whh_hbm, out_ref,
                         whh_vmem, xwb_vmem, sem):
    GP = GATE_PAD

    # Start streaming the 128 KiB bf16 recurrent weights; overlap with the hoisted
    # input projection below.
    cp = pltpu.make_async_copy(whh_hbm, whh_vmem, sem)
    cp.start()

    wih = pa_ref[ROW_WIH:ROW_WIH + 8, :]          # (8, 512) f32, rows >= INPUT_SIZE = 0
    b = pa_ref[ROW_B:ROW_B + 1, :]                # (1, 512)
    # Hoisted input projection: one matmul covers all timesteps and all 4 gates.
    # Spill to VMEM scratch so the loop reads row t with a plain vld (no sublane shuffle).
    xwb_vmem[...] = jnp.dot(x_ref[...], wih, preferred_element_type=jnp.float32) + b

    h = jnp.zeros((1, GP), jnp.float32)   # lanes >= HIDDEN_SIZE remain exactly 0
    c = jnp.zeros((1, GP), jnp.float32)
    logits = jnp.zeros((1, GP), jnp.float32)
    inv_h = 1.0 / HIDDEN_SIZE

    cp.wait()                             # recurrent weights resident from here on

    for t in range(SEQ_LEN):              # tiny static trip count -> fully unrolled
        # One fused (1,128)@(128,512) bf16 matmul per step for all 4 gates (f32 acc).
        pre = xwb_vmem[t:t + 1, :] + jnp.dot(
            h.astype(jnp.bfloat16), whh_vmem[...],
            preferred_element_type=jnp.float32)
        # Gate order i|f|o|g: one EUP tanh over the 3 contiguous sigmoid gates
        # (sigmoid(x) = 0.5*tanh(0.5*x) + 0.5), one tanh for the g gate.
        sig = 0.5 * jnp.tanh(0.5 * pre[:, 0:3 * GP]) + 0.5
        i_g = sig[:, 0 * GP:1 * GP]
        f_g = sig[:, 1 * GP:2 * GP]
        o_g = sig[:, 2 * GP:3 * GP]
        g_g = jnp.tanh(pre[:, 3 * GP:4 * GP])
        c = f_g * c + i_g * g_g
        h = o_g * jnp.tanh(c)
        # torch.mean(output, dim=2) + Linear(5,3) folded into a per-step accumulate
        # (off the h/c recurrent critical path; padded lanes of h are 0).
        mean_t = jnp.sum(h, axis=1, keepdims=True) * inv_h            # (1, 1)
        logits = logits + mean_t * pa_ref[ROW_FCW + t:ROW_FCW + t + 1, 0:GP]

    fcb = pa_ref[ROW_FCB:ROW_FCB + 1, 0:GP]
    out_ref[...] = 0.5 * jnp.tanh(0.5 * (logits + fcb)) + 0.5   # lane-dense (1,128) store


def init_params(key):
    """Deterministic synthetic parameters with the PyTorch module's shapes/init bounds."""
    H, I, S, C = HIDDEN_SIZE, INPUT_SIZE, SEQ_LEN, NUM_CLASS
    ks = jax.random.split(key, 6)
    bound = 1.0 / jnp.sqrt(jnp.float32(H))
    # nn.LSTM: weight_ih (4H, I), weight_hh (4H, H), bias_ih/bias_hh (4H,)
    # -> stacked per gate (i, f, g, o) and pre-transposed for right-multiplies.
    w_ih = jax.random.uniform(ks[0], (4, I, H), jnp.float32, -bound, bound)
    w_hh = jax.random.uniform(ks[1], (4, H, H), jnp.float32, -bound, bound)
    b_ih = jax.random.uniform(ks[2], (4, 1, H), jnp.float32, -bound, bound)
    b_hh = jax.random.uniform(ks[3], (4, 1, H), jnp.float32, -bound, bound)
    b = b_ih + b_hh  # PyTorch adds both bias vectors
    # nn.Linear(5, 3): weight (3, 5), bias (3,) -> pre-transposed weight (5, 3)
    fc_bound = 1.0 / jnp.sqrt(jnp.float32(S))
    fcw = jax.random.uniform(ks[4], (S, C), jnp.float32, -fc_bound, fc_bound)
    fcb = jax.random.uniform(ks[5], (1, C), jnp.float32, -fc_bound, fc_bound)
    return (w_ih, w_hh, b, fcw, fcb)


def pack_params(params):
    """Pack parameters into:
       - bufA: (32, 512) f32  -> W_ih / biases / fc weight+bias  (auto-DMA'd, ~64 KiB)
       - whh : (128, 512) bf16 -> recurrent weights per gate     (manual overlapped DMA)
    Gate lane regions use the i|f|o|g order; all padding is exactly zero."""
    w_ih, w_hh, b, fcw, fcb = params
    bufA = jnp.zeros((N_ROWS_A, PACK_W), jnp.float32)
    whh = jnp.zeros((GATE_PAD, PACK_W), jnp.float32)
    for k in range(4):                       # k in PyTorch order (i, f, g, o)
        col = GATE_REGION[k] * GATE_PAD
        bufA = bufA.at[ROW_WIH:ROW_WIH + INPUT_SIZE, col:col + HIDDEN_SIZE].set(w_ih[k])
        bufA = bufA.at[ROW_B, col:col + HIDDEN_SIZE].set(b[k, 0])
        whh = whh.at[:HIDDEN_SIZE, col:col + HIDDEN_SIZE].set(w_hh[k])
    bufA = bufA.at[ROW_FCW:ROW_FCW + SEQ_LEN, 0:NUM_CLASS].set(fcw)
    bufA = bufA.at[ROW_FCB, 0:NUM_CLASS].set(fcb[0])
    return bufA, whh.astype(jnp.bfloat16)


def rnn_model_forward(x, packed_params):
    """x: (1, S, I) batch_first; batch must be 1 (the PyTorch forward squeezes dim 0
    and the Linear(5,3) consumes the 5 per-timestep means)."""
    assert x.shape == (1, SEQ_LEN, INPUT_SIZE)
    bufA, whh = packed_params
    # Zero-pad x to a sublane-aligned (8, 8) f32 slab -> uniform, unragged DMA rows.
    x_pad = jnp.zeros((8, 8), jnp.float32)
    x_pad = x_pad.at[:SEQ_LEN, :INPUT_SIZE].set(x[0].astype(jnp.float32))

    cost = pl.CostEstimate(
        flops=2 * (8 * 8 * PACK_W + SEQ_LEN * GATE_PAD * PACK_W),
        transcendentals=SEQ_LEN * 5 * GATE_PAD + GATE_PAD,
        bytes_accessed=(8 * 8 * 4 + N_ROWS_A * PACK_W * 4
                        + GATE_PAD * PACK_W * 2 + GATE_PAD * 4),
    )

    out = pl.pallas_call(
        _lstm_mean_fc_kernel,
        out_shape=jax.ShapeDtypeStruct((1, GATE_PAD), jnp.float32),
        in_specs=[pl.BlockSpec(memory_space=pltpu.MemorySpace.VMEM),   # x slab
                  pl.BlockSpec(memory_space=pltpu.MemorySpace.VMEM),   # small f32 params
                  pl.BlockSpec(memory_space=pl.ANY)],                  # whh stays in HBM
        out_specs=pl.BlockSpec(memory_space=pltpu.MemorySpace.VMEM),
        scratch_shapes=[pltpu.VMEM((GATE_PAD, PACK_W), jnp.bfloat16),  # whh landing buf
                        pltpu.VMEM((8, PACK_W), jnp.float32),          # xwb spill
                        pltpu.SemaphoreType.DMA],
        cost_estimate=cost,
    )(x_pad, bufA, whh)

    return out[0, :NUM_CLASS]   # (num_class,) — matches PyTorch output shape (3,)


def _reference_forward(x, params):
    """Pure-JAX reference of the PyTorch module (for correctness check)."""
    w_ih, w_hh, b, fcw, fcb = params
    hp = jax.lax.Precision.HIGHEST
    xs = x[0].astype(jnp.float32)
    h = jnp.zeros((HIDDEN_SIZE,), jnp.float32)
    c = jnp.zeros((HIDDEN_SIZE,), jnp.float32)
    means = []
    for t in range(SEQ_LEN):
        xt = xs[t]
        def gate(k, act):
            return act(jnp.dot(xt, w_ih[k], precision=hp)
                       + jnp.dot(h, w_hh[k], precision=hp) + b[k, 0])
        i_g = gate(0, jax.nn.sigmoid)
        f_g = gate(1, jax.nn.sigmoid)
        g_g = gate(2, jnp.tanh)
        o_g = gate(3, jax.nn.sigmoid)
        c = f_g * c + i_g * g_g
        h = o_g * jnp.tanh(c)
        means.append(jnp.mean(h))
    feat = jnp.stack(means)                                   # (5,)
    logits = jnp.dot(feat, fcw, precision=hp) + fcb[0]        # (3,)
    return jax.nn.sigmoid(logits)


if __name__ == "__main__":
    key = jax.random.PRNGKey(0)
    k_x, k_p = jax.random.split(key)
    # Input consistent with the module: (batch=1, seq_len=5, input_size=6)
    x = jax.random.uniform(k_x, (1, SEQ_LEN, INPUT_SIZE), jnp.float32)
    params = init_params(k_p)
    packed = pack_params(params)

    out = rnn_model_forward(x, packed)
    out = jax.block_until_ready(out)
    assert out.shape == (NUM_CLASS,)
    assert bool(jnp.all(jnp.isfinite(out)))

    ref = _reference_forward(x, params)
    assert bool(jnp.allclose(out, ref, atol=2e-2, rtol=0.0)), (out, ref)

    print("KERNEL_OK")
</pallas_src>

<mosaic_0001>
module attributes {stable_mosaic.version = 11 : i64} {
  func.func @_lstm_mean_fc_kernel(%arg0: memref<8x8xf32, #tpu.memory_space<vmem>>, %arg1: memref<32x512xf32, #tpu.memory_space<vmem>>, %arg2: memref<128x512xbf16, #tpu.memory_space<any>>, %arg3: memref<1x128xf32, #tpu.memory_space<vmem>>, %arg4: memref<128x512xbf16, #tpu.memory_space<vmem>>, %arg5: memref<8x512xf32, #tpu.memory_space<vmem>>, %arg6: memref<!tpu.dma_semaphore, #tpu.memory_space<semaphore_mem>>) attributes {dimension_semantics = [], scalar_prefetch = 0 : i64, scratch_operands = 3 : i64, tpu.core_type = #tpu.core_type<tc>} {
    tpu.enqueue_dma source(%arg2 : memref<128x512xbf16, #tpu.memory_space<any>>) target(%arg4 : memref<128x512xbf16, #tpu.memory_space<vmem>>) target_semaphore(%arg6 : memref<!tpu.dma_semaphore, #tpu.memory_space<semaphore_mem>>)
    %c0 = arith.constant 0 : index
    %c0_0 = arith.constant 0 : index
    %0 = vector.load %arg1[%c0, %c0_0] : memref<32x512xf32, #tpu.memory_space<vmem>>, vector<8x512xf32>
    %c8 = arith.constant 8 : index
    %c0_1 = arith.constant 0 : index
    %1 = vector.load %arg1[%c8, %c0_1] : memref<32x512xf32, #tpu.memory_space<vmem>>, vector<1x512xf32>
    %c0_2 = arith.constant 0 : index
    %c0_3 = arith.constant 0 : index
    %2 = vector.load %arg0[%c0_2, %c0_3] : memref<8x8xf32, #tpu.memory_space<vmem>>, vector<8x8xf32>
    %cst = arith.constant dense<0.000000e+00> : vector<8x512xf32>
    %3 = tpu.matmul %2, %0, %cst {dimension_numbers = #tpu.dot_dimension_numbers<[1], [0], [0], [1], [0, 0, 1, 1], [], []>} : vector<8x8xf32>, vector<8x512xf32>, vector<8x512xf32> -> vector<8x512xf32>
    %4 = vector.broadcast %1 : vector<1x512xf32> to vector<8x512xf32>
    %5 = arith.addf %3, %4 : vector<8x512xf32>
    %c0_4 = arith.constant 0 : index
    %c0_5 = arith.constant 0 : index
    %6 = vector.load %arg5[%c0_4, %c0_5] : memref<8x512xf32, #tpu.memory_space<vmem>>, vector<8x512xf32>
    tpu.vector_store %arg5[%c0_4, %c0_5], %5 {strides = array<i32>} : memref<8x512xf32, #tpu.memory_space<vmem>>, vector<8x512xf32>,
    %cst_6 = arith.constant 0.000000e+00 : f32
    %7 = vector.broadcast %cst_6 : f32 to vector<1x128xf32>
    %cst_7 = arith.constant 0.000000e+00 : f32
    %8 = vector.broadcast %cst_7 : f32 to vector<1x128xf32>
    %cst_8 = arith.constant 0.000000e+00 : f32
    %9 = vector.broadcast %cst_8 : f32 to vector<1x128xf32>
    tpu.wait_dma2 semaphore(%arg6 : memref<!tpu.dma_semaphore, #tpu.memory_space<semaphore_mem>>) src(%arg2 : memref<128x512xbf16, #tpu.memory_space<any>>) dst(%arg4 : memref<128x512xbf16, #tpu.memory_space<vmem>>)
    %c0_9 = arith.constant 0 : index
    %c0_10 = arith.constant 0 : index
    %10 = vector.load %arg5[%c0_9, %c0_10] : memref<8x512xf32, #tpu.memory_space<vmem>>, vector<1x512xf32>
    %11 = arith.truncf %7 : vector<1x128xf32> to vector<1x128xbf16>
    %c0_11 = arith.constant 0 : index
    %c0_12 = arith.constant 0 : index
    %12 = vector.load %arg4[%c0_11, %c0_12] : memref<128x512xbf16, #tpu.memory_space<vmem>>, vector<128x512xbf16>
    %cst_13 = arith.constant dense<0.000000e+00> : vector<1x512xf32>
    %13 = tpu.matmul %11, %12, %cst_13 {dimension_numbers = #tpu.dot_dimension_numbers<[1], [0], [0], [1], [0, 0, 1, 1], [], []>} : vector<1x128xbf16>, vector<128x512xbf16>, vector<1x512xf32> -> vector<1x512xf32>
    %14 = arith.addf %10, %13 : vector<1x512xf32>
    %15 = vector.extract_strided_slice %14 {offsets = [0, 0], sizes = [1, 384], strides = [1, 1]} : vector<1x512xf32> to vector<1x384xf32>
    %cst_14 = arith.constant 5.000000e-01 : f32
    %16 = vector.broadcast %cst_14 : f32 to vector<1x384xf32>
    %17 = arith.mulf %16, %15 : vector<1x384xf32>
    %18 = math.tanh %17 : vector<1x384xf32>
    %cst_15 = arith.constant 5.000000e-01 : f32
    %19 = vector.broadcast %cst_15 : f32 to vector<1x384xf32>
    %20 = arith.mulf %19, %18 : vector<1x384xf32>
    %cst_16 = arith.constant 5.000000e-01 : f32
    %21 = vector.broadcast %cst_16 : f32 to vector<1x384xf32>
    %22 = arith.addf %20, %21 : vector<1x384xf32>
    %23 = vector.extract_strided_slice %22 {offsets = [0, 0], sizes = [1, 128], strides = [1, 1]} : vector<1x384xf32> to vector<1x128xf32>
    %24 = vector.extract_strided_slice %22 {offsets = [0, 128], sizes = [1, 128], strides = [1, 1]} : vector<1x384xf32> to vector<1x128xf32>
    %25 = vector.extract_strided_slice %22 {offsets = [0, 256], sizes = [1, 128], strides = [1, 1]} : vector<1x384xf32> to vector<1x128xf32>
    %26 = vector.extract_strided_slice %14 {offsets = [0, 384], sizes = [1, 128], strides = [1, 1]} : vector<1x512xf32> to vector<1x128xf32>
    %27 = math.tanh %26 : vector<1x128xf32>
    %28 = arith.mulf %24, %8 : vector<1x128xf32>
    %29 = arith.mulf %23, %27 : vector<1x128xf32>
    %30 = arith.addf %28, %29 : vector<1x128xf32>
    %31 = math.tanh %30 : vector<1x128xf32>
    %32 = arith.mulf %25, %31 : vector<1x128xf32>
    %cst_17 = arith.constant dense<0.000000e+00> : vector<1xf32>
    %33 = vector.multi_reduction <add>, %32, %cst_17 [1] : vector<1x128xf32> to vector<1xf32>
    %34 = vector.shape_cast %33 : vector<1xf32> to vector<1x1xf32>
    %cst_18 = arith.constant 1.000000e-01 : f32
    %35 = vector.broadcast %cst_18 : f32 to vector<1x1xf32>
    %36 = arith.mulf %34, %35 : vector<1x1xf32>
    %c16 = arith.constant 16 : index
    %c0_19 = arith.constant 0 : index
    %37 = vector.load %arg1[%c16, %c0_19] : memref<32x512xf32, #tpu.memory_space<vmem>>, vector<1x128xf32>
    %38 = vector.broadcast %36 : vector<1x1xf32> to vector<1x128xf32>
    %39 = arith.mulf %38, %37 : vector<1x128xf32>
    %40 = arith.addf %9, %39 : vector<1x128xf32>
    %c1 = arith.constant 1 : index
    %c0_20 = arith.constant 0 : index
    %41 = vector.load %arg5[%c1, %c0_20] : memref<8x512xf32, #tpu.memory_space<vmem>>, vector<1x512xf32>
    %42 = arith.truncf %32 : vector<1x128xf32> to vector<1x128xbf16>
    %c0_21 = arith.constant 0 : index
    %c0_22 = arith.constant 0 : index
    %43 = vector.load %arg4[%c0_21, %c0_22] : memref<128x512xbf16, #tpu.memory_space<vmem>>, vector<128x512xbf16>
    %cst_23 = arith.constant dense<0.000000e+00> : vector<1x512xf32>
    %44 = tpu.matmul %42, %43, %cst_23 {dimension_numbers = #tpu.dot_dimension_numbers<[1], [0], [0], [1], [0, 0, 1, 1], [], []>} : vector<1x128xbf16>, vector<128x512xbf16>, vector<1x512xf32> -> vector<1x512xf32>
    %45 = arith.addf %41, %44 : vector<1x512xf32>
    %46 = vector.extract_strided_slice %45 {offsets = [0, 0], sizes = [1, 384], strides = [1, 1]} : vector<1x512xf32> to vector<1x384xf32>
    %cst_24 = arith.constant 5.000000e-01 : f32
    %47 = vector.broadcast %cst_24 : f32 to vector<1x384xf32>
    %48 = arith.mulf %47, %46 : vector<1x384xf32>
    %49 = math.tanh %48 : vector<1x384xf32>
    %cst_25 = arith.constant 5.000000e-01 : f32
    %50 = vector.broadcast %cst_25 : f32 to vector<1x384xf32>
    %51 = arith.mulf %50, %49 : vector<1x384xf32>
    %cst_26 = arith.constant 5.000000e-01 : f32
    %52 = vector.broadcast %cst_26 : f32 to vector<1x384xf32>
    %53 = arith.addf %51, %52 : vector<1x384xf32>
    %54 = vector.extract_strided_slice %53 {offsets = [0, 0], sizes = [1, 128], strides = [1, 1]} : vector<1x384xf32> to vector<1x128xf32>
    %55 = vector.extract_strided_slice %53 {offsets = [0, 128], sizes = [1, 128], strides = [1, 1]} : vector<1x384xf32> to vector<1x128xf32>
    %56 = vector.extract_strided_slice %53 {offsets = [0, 256], sizes = [1, 128], strides = [1, 1]} : vector<1x384xf32> to vector<1x128xf32>
    %57 = vector.extract_strided_slice %45 {offsets = [0, 384], sizes = [1, 128], strides = [1, 1]} : vector<1x512xf32> to vector<1x128xf32>
    %58 = math.tanh %57 : vector<1x128xf32>
    %59 = arith.mulf %55, %30 : vector<1x128xf32>
    %60 = arith.mulf %54, %58 : vector<1x128xf32>
    %61 = arith.addf %59, %60 : vector<1x128xf32>
    %62 = math.tanh %61 : vector<1x128xf32>
    %63 = arith.mulf %56, %62 : vector<1x128xf32>
    %cst_27 = arith.constant dense<0.000000e+00> : vector<1xf32>
    %64 = vector.multi_reduction <add>, %63, %cst_27 [1] : vector<1x128xf32> to vector<1xf32>
    %65 = vector.shape_cast %64 : vector<1xf32> to vector<1x1xf32>
    %cst_28 = arith.constant 1.000000e-01 : f32
    %66 = vector.broadcast %cst_28 : f32 to vector<1x1xf32>
    %67 = arith.mulf %65, %66 : vector<1x1xf32>
    %c17 = arith.constant 17 : index
    %c0_29 = arith.constant 0 : index
    %68 = vector.load %arg1[%c17, %c0_29] : memref<32x512xf32, #tpu.memory_space<vmem>>, vector<1x128xf32>
    %69 = vector.broadcast %67 : vector<1x1xf32> to vector<1x128xf32>
    %70 = arith.mulf %69, %68 : vector<1x128xf32>
    %71 = arith.addf %40, %70 : vector<1x128xf32>
    %c2 = arith.constant 2 : index
    %c0_30 = arith.constant 0 : index
    %72 = vector.load %arg5[%c2, %c0_30] : memref<8x512xf32, #tpu.memory_space<vmem>>, vector<1x512xf32>
    %73 = arith.truncf %63 : vector<1x128xf32> to vector<1x128xbf16>
    %c0_31 = arith.constant 0 : index
    %c0_32 = arith.constant 0 : index
    %74 = vector.load %arg4[%c0_31, %c0_32] : memref<128x512xbf16, #tpu.memory_space<vmem>>, vector<128x512xbf16>
    %cst_33 = arith.constant dense<0.000000e+00> : vector<1x512xf32>
    %75 = tpu.matmul %73, %74, %cst_33 {dimension_numbers = #tpu.dot_dimension_numbers<[1], [0], [0], [1], [0, 0, 1, 1], [], []>} : vector<1x128xbf16>, vector<128x512xbf16>, vector<1x512xf32> -> vector<1x512xf32>
    %76 = arith.addf %72, %75 : vector<1x512xf32>
    %77 = vector.extract_strided_slice %76 {offsets = [0, 0], sizes = [1, 384], strides = [1, 1]} : vector<1x512xf32> to vector<1x384xf32>
    %cst_34 = arith.constant 5.000000e-01 : f32
    %78 = vector.broadcast %cst_34 : f32 to vector<1x384xf32>
    %79 = arith.mulf %78, %77 : vector<1x384xf32>
    %80 = math.tanh %79 : vector<1x384xf32>
    %cst_35 = arith.constant 5.000000e-01 : f32
    %81 = vector.broadcast %cst_35 : f32 to vector<1x384xf32>
    %82 = arith.mulf %81, %80 : vector<1x384xf32>
    %cst_36 = arith.constant 5.000000e-01 : f32
    %83 = vector.broadcast %cst_36 : f32 to vector<1x384xf32>
    %84 = arith.addf %82, %83 : vector<1x384xf32>
    %85 = vector.extract_strided_slice %84 {offsets = [0, 0], sizes = [1, 128], strides = [1, 1]} : vector<1x384xf32> to vector<1x128xf32>
    %86 = vector.extract_strided_slice %84 {offsets = [0, 128], sizes = [1, 128], strides = [1, 1]} : vector<1x384xf32> to vector<1x128xf32>
    %87 = vector.extract_strided_slice %84 {offsets = [0, 256], sizes = [1, 128], strides = [1, 1]} : vector<1x384xf32> to vector<1x128xf32>
    %88 = vector.extract_strided_slice %76 {offsets = [0, 384], sizes = [1, 128], strides = [1, 1]} : vector<1x512xf32> to vector<1x128xf32>
    %89 = math.tanh %88 : vector<1x128xf32>
    %90 = arith.mulf %86, %61 : vector<1x128xf32>
    %91 = arith.mulf %85, %89 : vector<1x128xf32>
    %92 = arith.addf %90, %91 : vector<1x128xf32>
    %93 = math.tanh %92 : vector<1x128xf32>
    %94 = arith.mulf %87, %93 : vector<1x128xf32>
    %cst_37 = arith.constant dense<0.000000e+00> : vector<1xf32>
    %95 = vector.multi_reduction <add>, %94, %cst_37 [1] : vector<1x128xf32> to vector<1xf32>
    %96 = vector.shape_cast %95 : vector<1xf32> to vector<1x1xf32>
    %cst_38 = arith.constant 1.000000e-01 : f32
    %97 = vector.broadcast %cst_38 : f32 to vector<1x1xf32>
    %98 = arith.mulf %96, %97 : vector<1x1xf32>
    %c18 = arith.constant 18 : index
    %c0_39 = arith.constant 0 : index
    %99 = vector.load %arg1[%c18, %c0_39] : memref<32x512xf32, #tpu.memory_space<vmem>>, vector<1x128xf32>
    %100 = vector.broadcast %98 : vector<1x1xf32> to vector<1x128xf32>
    %101 = arith.mulf %100, %99 : vector<1x128xf32>
    %102 = arith.addf %71, %101 : vector<1x128xf32>
    %c3 = arith.constant 3 : index
    %c0_40 = arith.constant 0 : index
    %103 = vector.load %arg5[%c3, %c0_40] : memref<8x512xf32, #tpu.memory_space<vmem>>, vector<1x512xf32>
    %104 = arith.truncf %94 : vector<1x128xf32> to vector<1x128xbf16>
    %c0_41 = arith.constant 0 : index
    %c0_42 = arith.constant 0 : index
    %105 = vector.load %arg4[%c0_41, %c0_42] : memref<128x512xbf16, #tpu.memory_space<vmem>>, vector<128x512xbf16>
    %cst_43 = arith.constant dense<0.000000e+00> : vector<1x512xf32>
    %106 = tpu.matmul %104, %105, %cst_43 {dimension_numbers = #tpu.dot_dimension_numbers<[1], [0], [0], [1], [0, 0, 1, 1], [], []>} : vector<1x128xbf16>, vector<128x512xbf16>, vector<1x512xf32> -> vector<1x512xf32>
    %107 = arith.addf %103, %106 : vector<1x512xf32>
    %108 = vector.extract_strided_slice %107 {offsets = [0, 0], sizes = [1, 384], strides = [1, 1]} : vector<1x512xf32> to vector<1x384xf32>
    %cst_44 = arith.constant 5.000000e-01 : f32
    %109 = vector.broadcast %cst_44 : f32 to vector<1x384xf32>
    %110 = arith.mulf %109, %108 : vector<1x384xf32>
    %111 = math.tanh %110 : vector<1x384xf32>
    %cst_45 = arith.constant 5.000000e-01 : f32
    %112 = vector.broadcast %cst_45 : f32 to vector<1x384xf32>
    %113 = arith.mulf %112, %111 : vector<1x384xf32>
    %cst_46 = arith.constant 5.000000e-01 : f32
    %114 = vector.broadcast %cst_46 : f32 to vector<1x384xf32>
    %115 = arith.addf %113, %114 : vector<1x384xf32>
    %116 = vector.extract_strided_slice %115 {offsets = [0, 0], sizes = [1, 128], strides = [1, 1]} : vector<1x384xf32> to vector<1x128xf32>
    %117 = vector.extract_strided_slice %115 {offsets = [0, 128], sizes = [1, 128], strides = [1, 1]} : vector<1x384xf32> to vector<1x128xf32>
    %118 = vector.extract_strided_slice %115 {offsets = [0, 256], sizes = [1, 128], strides = [1, 1]} : vector<1x384xf32> to vector<1x128xf32>
    %119 = vector.extract_strided_slice %107 {offsets = [0, 384], sizes = [1, 128], strides = [1, 1]} : vector<1x512xf32> to vector<1x128xf32>
    %120 = math.tanh %119 : vector<1x128xf32>
    %121 = arith.mulf %117, %92 : vector<1x128xf32>
    %122 = arith.mulf %116, %120 : vector<1x128xf32>
    %123 = arith.addf %121, %122 : vector<1x128xf32>
    %124 = math.tanh %123 : vector<1x128xf32>
    %125 = arith.mulf %118, %124 : vector<1x128xf32>
    %cst_47 = arith.constant dense<0.000000e+00> : vector<1xf32>
    %126 = vector.multi_reduction <add>, %125, %cst_47 [1] : vector<1x128xf32> to vector<1xf32>
    %127 = vector.shape_cast %126 : vector<1xf32> to vector<1x1xf32>
    %cst_48 = arith.constant 1.000000e-01 : f32
    %128 = vector.broadcast %cst_48 : f32 to vector<1x1xf32>
    %129 = arith.mulf %127, %128 : vector<1x1xf32>
    %c19 = arith.constant 19 : index
    %c0_49 = arith.constant 0 : index
    %130 = vector.load %arg1[%c19, %c0_49] : memref<32x512xf32, #tpu.memory_space<vmem>>, vector<1x128xf32>
    %131 = vector.broadcast %129 : vector<1x1xf32> to vector<1x128xf32>
    %132 = arith.mulf %131, %130 : vector<1x128xf32>
    %133 = arith.addf %102, %132 : vector<1x128xf32>
    %c4 = arith.constant 4 : index
    %c0_50 = arith.constant 0 : index
    %134 = vector.load %arg5[%c4, %c0_50] : memref<8x512xf32, #tpu.memory_space<vmem>>, vector<1x512xf32>
    %135 = arith.truncf %125 : vector<1x128xf32> to vector<1x128xbf16>
    %c0_51 = arith.constant 0 : index
    %c0_52 = arith.constant 0 : index
    %136 = vector.load %arg4[%c0_51, %c0_52] : memref<128x512xbf16, #tpu.memory_space<vmem>>, vector<128x512xbf16>
    %cst_53 = arith.constant dense<0.000000e+00> : vector<1x512xf32>
    %137 = tpu.matmul %135, %136, %cst_53 {dimension_numbers = #tpu.dot_dimension_numbers<[1], [0], [0], [1], [0, 0, 1, 1], [], []>} : vector<1x128xbf16>, vector<128x512xbf16>, vector<1x512xf32> -> vector<1x512xf32>
    %138 = arith.addf %134, %137 : vector<1x512xf32>
    %139 = vector.extract_strided_slice %138 {offsets = [0, 0], sizes = [1, 384], strides = [1, 1]} : vector<1x512xf32> to vector<1x384xf32>
    %cst_54 = arith.constant 5.000000e-01 : f32
    %140 = vector.broadcast %cst_54 : f32 to vector<1x384xf32>
    %141 = arith.mulf %140, %139 : vector<1x384xf32>
    %142 = math.tanh %141 : vector<1x384xf32>
    %cst_55 = arith.constant 5.000000e-01 : f32
    %143 = vector.broadcast %cst_55 : f32 to vector<1x384xf32>
    %144 = arith.mulf %143, %142 : vector<1x384xf32>
    %cst_56 = arith.constant 5.000000e-01 : f32
    %145 = vector.broadcast %cst_56 : f32 to vector<1x384xf32>
    %146 = arith.addf %144, %145 : vector<1x384xf32>
    %147 = vector.extract_strided_slice %146 {offsets = [0, 0], sizes = [1, 128], strides = [1, 1]} : vector<1x384xf32> to vector<1x128xf32>
    %148 = vector.extract_strided_slice %146 {offsets = [0, 128], sizes = [1, 128], strides = [1, 1]} : vector<1x384xf32> to vector<1x128xf32>
    %149 = vector.extract_strided_slice %146 {offsets = [0, 256], sizes = [1, 128], strides = [1, 1]} : vector<1x384xf32> to vector<1x128xf32>
    %150 = vector.extract_strided_slice %138 {offsets = [0, 384], sizes = [1, 128], strides = [1, 1]} : vector<1x512xf32> to vector<1x128xf32>
    %151 = math.tanh %150 : vector<1x128xf32>
    %152 = arith.mulf %148, %123 : vector<1x128xf32>
    %153 = arith.mulf %147, %151 : vector<1x128xf32>
    %154 = arith.addf %152, %153 : vector<1x128xf32>
    %155 = math.tanh %154 : vector<1x128xf32>
    %156 = arith.mulf %149, %155 : vector<1x128xf32>
    %cst_57 = arith.constant dense<0.000000e+00> : vector<1xf32>
    %157 = vector.multi_reduction <add>, %156, %cst_57 [1] : vector<1x128xf32> to vector<1xf32>
    %158 = vector.shape_cast %157 : vector<1xf32> to vector<1x1xf32>
    %cst_58 = arith.constant 1.000000e-01 : f32
    %159 = vector.broadcast %cst_58 : f32 to vector<1x1xf32>
    %160 = arith.mulf %158, %159 : vector<1x1xf32>
    %c20 = arith.constant 20 : index
    %c0_59 = arith.constant 0 : index
    %161 = vector.load %arg1[%c20, %c0_59] : memref<32x512xf32, #tpu.memory_space<vmem>>, vector<1x128xf32>
    %162 = vector.broadcast %160 : vector<1x1xf32> to vector<1x128xf32>
    %163 = arith.mulf %162, %161 : vector<1x128xf32>
    %164 = arith.addf %133, %163 : vector<1x128xf32>
    %c24 = arith.constant 24 : index
    %c0_60 = arith.constant 0 : index
    %165 = vector.load %arg1[%c24, %c0_60] : memref<32x512xf32, #tpu.memory_space<vmem>>, vector<1x128xf32>
    %166 = arith.addf %164, %165 : vector<1x128xf32>
    %cst_61 = arith.constant 5.000000e-01 : f32
    %167 = vector.broadcast %cst_61 : f32 to vector<1x128xf32>
    %168 = arith.mulf %167, %166 : vector<1x128xf32>
    %169 = math.tanh %168 : vector<1x128xf32>
    %cst_62 = arith.constant 5.000000e-01 : f32
    %170 = vector.broadcast %cst_62 : f32 to vector<1x128xf32>
    %171 = arith.mulf %170, %169 : vector<1x128xf32>
    %cst_63 = arith.constant 5.000000e-01 : f32
    %172 = vector.broadcast %cst_63 : f32 to vector<1x128xf32>
    %173 = arith.addf %171, %172 : vector<1x128xf32>
    %c0_64 = arith.constant 0 : index
    %c0_65 = arith.constant 0 : index
    %174 = vector.load %arg3[%c0_64, %c0_65] : memref<1x128xf32, #tpu.memory_space<vmem>>, vector<1x128xf32>
    tpu.vector_store %arg3[%c0_64, %c0_65], %173 {strides = array<i32>} : memref<1x128xf32, #tpu.memory_space<vmem>>, vector<1x128xf32>,
    return
  }
}

</mosaic_0001>

<llo_original>
// kernel: tpu_custom_call.1
$region0: #{tpu_custom_call.1}
  #allocation0 [shape = 'u32[]', space=smem, size = 0x4, offset = 0x4, fixed_abs, tag = 'smem constant byte address 0x4 - core index']
  #allocation1 [shape = 'u32[144,128]{1,0:T(1,128)}', space=vmem, size = 0x12000, scoped, tag = 'internal scratch']
  #allocation2 [shape = 'bf16[128,512]{1,0:T(8,128)(2,1)}', space=vmem, size = 0x20000, scoped, tag = 'scratch operand']
  #allocation3 [shape = 'f32[8,512]{1,0:T(8,128)}', space=vmem, size = 0x4000, scoped, tag = 'scratch operand']
  #allocation4 [shape = 's32[1]{0}', space=sflag, size = 0x4, scoped, tag = 'scratch operand']
  #allocation11 [shape = 's32[]', space=sflag, size = 0x4, offset = 0, fixed_abs, tag = 'sflag constant byte address 0x0 - dummy sync flag']
  #allocation12 [shape = 's32[]', space=sflag, size = 0x4, offset = 0, fixed_abs, tag = 'sflag constant byte address 0x0 - dummy sync flag']
  #allocation13 [shape = 'u32[]', space=smem, size = 0x4, offset = 0x44, fixed_abs, tag = 'smem constant byte address 0x44 - assertion arg 0']
  #allocation14 [shape = 'u32[]', space=smem, size = 0x4, offset = 0x48, fixed_abs, tag = 'smem constant byte address 0x48 - assertion arg 1']
  %s0 = inlined_call_operand.hbm [shape: f32[8,8], index: 0, kind: input, shape index: {}]
  %s1 = inlined_call_operand.hbm [shape: f32[32,512], index: 1, kind: input, shape index: {}]
  %s2 = inlined_call_operand.hbm [shape: bf16[128,512], index: 2, kind: input, shape index: {}]
  %s3 = inlined_call_operand.hbm [shape: f32[1,128], index: 3, kind: output, shape index: {}]
  %s4 = sld [smem:[#allocation0]]
  $region30: #{tpu_custom_call.1} parent=0
    _
  %s6 = ssub.s32 1, %s4
  %s7 = scalar_select 0, %s6, %s4
  $region1: #{tpu_custom_call.1} parent=0
    #allocation5 [shape = 'u8[4096]{0}', space=vmem, size = 0x1000, scoped, tag = 'input window, operand 0, single buffered']
    #allocation6 [shape = 's32[1]{0}', space=sflag, size = 0x4, scoped, tag = 'scoped memory for tpu_custom_call.1']
    #allocation7 [shape = 's32[1]{0}', space=sflag, size = 0x4, scoped, tag = 'scoped memory for tpu_custom_call.1']
    #allocation8 [shape = 'u8[65536]{0}', space=vmem, size = 0x10000, scoped, tag = 'input window, operand 1, single buffered']
    #allocation9 [shape = 's32[1]{0}', space=sflag, size = 0x4, scoped, tag = 'scoped memory for tpu_custom_call.1']
    #allocation10 [shape = 'u8[512]{0}', space=vmem, size = 0x400, scoped, tag = 'output window, operand 0, single buffered']
    %8 = vsyncpa [#allocation6], 0
    %9 = vsyncpa [#allocation9], 0
    %10 = vsyncpa [#allocation7], 0
    // Predicated region
    $region2: #{tpu_custom_call.1} parent=1 // pred_check
      _
    $region3: #{tpu_custom_call.1} parent=1 // pred_check_branch
      %12 = sbr.rel (0) target = $region5
    $region4: #{tpu_custom_call.1} parent=1 // pred_region
      %s14 = ssub.s32 128, 128
      %15 = vsyncadd [#allocation6], %s14
      %s17 = sshll.u32 [#allocation5], 4
      %s18 = int_to_ptr.vmem [resolvable:$true] %s17
      %20 = dma.hbm_to_vmem [thread:$0]  %s0, 128, %s18, [#allocation6]
    $region5: #{tpu_custom_call.1} parent=1 // pred_fallthru
      _
    // Predicated region
    $region6: #{tpu_custom_call.1} parent=1 // pred_check
      _
    $region7: #{tpu_custom_call.1} parent=1 // pred_check_branch
      %22 = sbr.rel (0) target = $region9
    $region8: #{tpu_custom_call.1} parent=1 // pred_region
      %s24 = ssub.s32 2048, 2048
      %25 = vsyncadd [#allocation9], %s24
      %s26 = sshll.u32 [#allocation8], 4
      %s27 = int_to_ptr.vmem [resolvable:$true] %s26
      %32 = dma.hbm_to_vmem [thread:$0]  %s1, 2048, %s27, [#allocation9], 512, 512, 32
    $region9: #{tpu_custom_call.1} parent=1 // pred_fallthru
      _
    // Predicated region
    $region10: #{tpu_custom_call.1} parent=1 // pred_check
      _
    $region11: #{tpu_custom_call.1} parent=1 // pred_check_branch
      %34 = sbr.rel (0) target = $region13
    $region12: #{tpu_custom_call.1} parent=1 // pred_region
      %35 = dma.done [#allocation6], 128
    $region13: #{tpu_custom_call.1} parent=1 // pred_fallthru
      _
    // Predicated region
    $region14: #{tpu_custom_call.1} parent=1 // pred_check
      _
    $region15: #{tpu_custom_call.1} parent=1 // pred_check_branch
      %37 = sbr.rel (0) target = $region17
    $region16: #{tpu_custom_call.1} parent=1 // pred_region
      %38 = dma.done [#allocation9], 2048
    $region17: #{tpu_custom_call.1} parent=1 // pred_fallthru
      _
    // Predicated region
    $region18: #{tpu_custom_call.1} parent=1 // pred_check
      _
    $region19: #{tpu_custom_call.1} parent=1 // pred_check_branch
      %41 = sbr.rel target = $region21
    $region20: #{tpu_custom_call.1} parent=1 // pred_region
      %42 = sst [smem:[#allocation13]] [#allocation12]
      %43 = sst [smem:[#allocation14]] [#allocation11]
    $region21: #{tpu_custom_call.1} parent=1 // pred_fallthru
      _
    %45 = shalt.err (0)
    %s47 = sshll.u32 [#allocation2], 4
    %s48 = int_to_ptr.vmem [resolvable:$true] %s47
    %50 = dma.hbm_to_vmem [thread:$0]  %s2, 4096, %s48, [#allocation4]
    %v51 = vld [vmem:[#allocation8] sm:$0xff]
    %v52 = vld [vmem:[#allocation8 + $0x8] sm:$0xff]
    %v53 = vld [vmem:[#allocation8 + $0x10] sm:$0xff]
    %v54 = vld [vmem:[#allocation8 + $0x18] sm:$0xff]
    %s55 = scalar_lea.vmem [#allocation8], 32
    %v56 = vld [vmem:[%s55] ss:$8 sm:$0xf]
    %v57 = vld [vmem:[#allocation5] sm:$0xff]
    %v59 = vlaneseq
    %v60 = vshrl.u32 %v59, 7
    %v61 = vsub.s32 0, %v60
    %v62 = vrot.slane %v56, %v61
    %v63 = vlaneseq
    %v64 = vshrl.u32 %v63, 7
    %v65 = vsub.s32 1, %v64
    %v66 = vrot.slane %v56, %v65
    %v67 = vlaneseq
    %v68 = vshrl.u32 %v67, 7
    %v69 = vsub.s32 2, %v68
    %v70 = vrot.slane %v56, %v69
    %v71 = vlaneseq
    %v72 = vshrl.u32 %v71, 7
    %v73 = vsub.s32 3, %v72
    %v74 = vrot.slane %v56, %v73
    %vm79 = vcmask 64512
    %v81 = vsel %vm79, %v57, 0
    %83 = vmatprep.subr.mxu0 0.0
    %84 = vmatpush1.msra.mxu0 0.0
    %85 = vmatprep.subr.mxu0 0.0
    %86 = vmatpush1.msra.mxu0 0.0
    %87 = vmatprep.subr.mxu0 0.0
    %88 = vmatpush1.msra.mxu0 0.0
    %89 = vmatprep.subr.mxu0 0.0
    %90 = vmatpush1.msra.mxu0 0.0
    %91 = vmatprep.subr.mxu0 0.0
    %92 = vmatpush1.msra.mxu0 0.0
    %93 = vmatprep.subr.mxu0 0.0
    %94 = vmatpush1.msra.mxu0 0.0
    %95 = vmatprep.subr.mxu0 0.0
    %96 = vmatpush1.msra.mxu0 0.0
    %97 = vmatprep.subr.mxu0 0.0
    %98 = vmatpush1.msra.mxu0 0.0
    %99 = vmatprep.subr.mxu0 0.0
    %100 = vmatpush1.msra.mxu0 0.0
    %101 = vmatprep.subr.mxu0 0.0
    %102 = vmatpush1.msra.mxu0 0.0
    %103 = vmatprep.subr.mxu0 0.0
    %104 = vmatpush1.msra.mxu0 0.0
    %105 = vmatprep.subr.mxu0 0.0
    %106 = vmatpush1.msra.mxu0 0.0
    %107 = vmatprep.subr.mxu0 0.0
    %108 = vmatpush1.msra.mxu0 0.0
    %109 = vmatprep.subr.mxu0 0.0
    %110 = vmatpush1.msra.mxu0 0.0
    %111 = vmatprep.subr.mxu0 0.0
    %112 = vmatpush1.msra.mxu0 0.0
    %113 = vmatprep.subr.mxu0 %v52
    %114 = vmatpush1.msra.mxu0 %v51
    %115 = vmatprep.subr.mxu0 0.0
    %116 = vmatpush2.msra.mxu0 0.0
    %117 = vmatprep.subr.mxu0 0.0
    %118 = vmatpush2.msra.mxu0 0.0
    %119 = vmatprep.subr.mxu0 0.0
    %120 = vmatpush2.msra.mxu0 0.0
    %121 = vmatprep.subr.mxu0 0.0
    %122 = vmatpush2.msra.mxu0 0.0
    %123 = vmatprep.subr.mxu0 0.0
    %124 = vmatpush2.msra.mxu0 0.0
    %125 = vmatprep.subr.mxu0 0.0
    %126 = vmatpush2.msra.mxu0 0.0
    %127 = vmatprep.subr.mxu0 0.0
    %128 = vmatpush2.msra.mxu0 0.0
    %129 = vmatprep.subr.mxu0 0.0
    %130 = vmatpush2.msra.mxu0 0.0
    %131 = vmatprep.subr.mxu0 0.0
    %132 = vmatpush2.msra.mxu0 0.0
    %133 = vmatprep.subr.mxu0 0.0
    %134 = vmatpush2.msra.mxu0 0.0
    %135 = vmatprep.subr.mxu0 0.0
    %136 = vmatpush2.msra.mxu0 0.0
    %137 = vmatprep.subr.mxu0 0.0
    %138 = vmatpush2.msra.mxu0 0.0
    %139 = vmatprep.subr.mxu0 0.0
    %140 = vmatpush2.msra.mxu0 0.0
    %141 = vmatprep.subr.mxu0 0.0
    %142 = vmatpush2.msra.mxu0 0.0
    %143 = vmatprep.subr.mxu0 0.0
    %144 = vmatpush2.msra.mxu0 0.0
    %145 = vmatprep.subr.mxu0 0.0
    %146 = vmatpush2.msra.mxu0 0.0
    %147 = vmatprep.mubr.f32.mxu0 0.0
    %148 = vmatmul.mubr.f32.gmra.mxu0 %v81
    %v149 = vpop.f32.mrf.mxu0
    %v150 = vadd.f32 %v62, %v149
    %v151 = vpop.f32.mrf.mxu0
    %v152 = vadd.f32 %v66, %v151
    %153 = vdwg.mxu0
    %154 = vmatprep.subr.mxu0 0.0
    %155 = vmatpush1.msra.mxu0 0.0
    %156 = vmatprep.subr.mxu0 0.0
    %157 = vmatpush1.msra.mxu0 0.0
    %158 = vmatprep.subr.mxu0 0.0
    %159 = vmatpush1.msra.mxu0 0.0
    %160 = vmatprep.subr.mxu0 0.0
    %161 = vmatpush1.msra.mxu0 0.0
    %162 = vmatprep.subr.mxu0 0.0
    %163 = vmatpush1.msra.mxu0 0.0
    %164 = vmatprep.subr.mxu0 0.0
    %165 = vmatpush1.msra.mxu0 0.0
    %166 = vmatprep.subr.mxu0 0.0
    %167 = vmatpush1.msra.mxu0 0.0
    %168 = vmatprep.subr.mxu0 0.0
    %169 = vmatpush1.msra.mxu0 0.0
    %170 = vmatprep.subr.mxu0 0.0
    %171 = vmatpush1.msra.mxu0 0.0
    %172 = vmatprep.subr.mxu0 0.0
    %173 = vmatpush1.msra.mxu0 0.0
    %174 = vmatprep.subr.mxu0 0.0
    %175 = vmatpush1.msra.mxu0 0.0
    %176 = vmatprep.subr.mxu0 0.0
    %177 = vmatpush1.msra.mxu0 0.0
    %178 = vmatprep.subr.mxu0 0.0
    %179 = vmatpush1.msra.mxu0 0.0
    %180 = vmatprep.subr.mxu0 0.0
    %181 = vmatpush1.msra.mxu0 0.0
    %182 = vmatprep.subr.mxu0 0.0
    %183 = vmatpush1.msra.mxu0 0.0
    %184 = vmatprep.subr.mxu0 %v54
    %185 = vmatpush1.msra.mxu0 %v53
    %186 = vmatprep.subr.mxu0 0.0
    %187 = vmatpush2.msra.mxu0 0.0
    %188 = vmatprep.subr.mxu0 0.0
    %189 = vmatpush2.msra.mxu0 0.0
    %190 = vmatprep.subr.mxu0 0.0
    %191 = vmatpush2.msra.mxu0 0.0
    %192 = vmatprep.subr.mxu0 0.0
    %193 = vmatpush2.msra.mxu0 0.0
    %194 = vmatprep.subr.mxu0 0.0
    %195 = vmatpush2.msra.mxu0 0.0
    %196 = vmatprep.subr.mxu0 0.0
    %197 = vmatpush2.msra.mxu0 0.0
    %198 = vmatprep.subr.mxu0 0.0
    %199 = vmatpush2.msra.mxu0 0.0
    %200 = vmatprep.subr.mxu0 0.0
    %201 = vmatpush2.msra.mxu0 0.0
    %202 = vmatprep.subr.mxu0 0.0
    %203 = vmatpush2.msra.mxu0 0.0
    %204 = vmatprep.subr.mxu0 0.0
    %205 = vmatpush2.msra.mxu0 0.0
    %206 = vmatprep.subr.mxu0 0.0
    %207 = vmatpush2.msra.mxu0 0.0
    %208 = vmatprep.subr.mxu0 0.0
    %209 = vmatpush2.msra.mxu0 0.0
    %210 = vmatprep.subr.mxu0 0.0
    %211 = vmatpush2.msra.mxu0 0.0
    %212 = vmatprep.subr.mxu0 0.0
    %213 = vmatpush2.msra.mxu0 0.0
    %214 = vmatprep.subr.mxu0 0.0
    %215 = vmatpush2.msra.mxu0 0.0
    %216 = vmatprep.subr.mxu0 0.0
    %217 = vmatpush2.msra.mxu0 0.0
    %218 = vmatprep.mubr.f32.mxu0 0.0
    %219 = vmatmul.mubr.f32.gmra.mxu0 %v81
    %v220 = vpop.f32.mrf.mxu0
    %v221 = vadd.f32 %v70, %v220
    %v222 = vpop.f32.mrf.mxu0
    %v223 = vadd.f32 %v74, %v222
    %224 = vdwg.mxu0
    %225 = vst [vmem:[#allocation3] sm:$0xff] %v150
    %226 = vst [vmem:[#allocation3 + $0x8] sm:$0xff] %v152
    %227 = vst [vmem:[#allocation3 + $0x10] sm:$0xff] %v221
    %228 = vst [vmem:[#allocation3 + $0x18] sm:$0xff] %v223
    %s229 = smul.u32 4, 16
    %s230 = smul.u32 %s229, 4
    %s231 = sshll.u32 %s230, 4
    %232 = dma.done [#allocation4], %s231
    %v233 = vld [vmem:[#allocation3] ss:$8 sm:$0xf]
    %v234 = vld [vmem:[#allocation2] sm:$0xff]
    %v235 = vld [vmem:[#allocation2 + $0x8] sm:$0xff]
    %v236 = vld [vmem:[#allocation2 + $0x10] sm:$0xff]
    %v237 = vld [vmem:[#allocation2 + $0x18] sm:$0xff]
    %v238 = vld [vmem:[#allocation2 + $0x20] sm:$0xff]
    %v239 = vld [vmem:[#allocation2 + $0x28] sm:$0xff]
    %v240 = vld [vmem:[#allocation2 + $0x30] sm:$0xff]
    %v241 = vld [vmem:[#allocation2 + $0x38] sm:$0xff]
    %v242 = vld [vmem:[#allocation2 + $0x40] sm:$0xff]
    %v243 = vld [vmem:[#allocation2 + $0x48] sm:$0xff]
    %v244 = vld [vmem:[#allocation2 + $0x50] sm:$0xff]
    %v245 = vld [vmem:[#allocation2 + $0x58] sm:$0xff]
    %v246 = vld [vmem:[#allocation2 + $0x60] sm:$0xff]
    %v247 = vld [vmem:[#allocation2 + $0x68] sm:$0xff]
    %v248 = vld [vmem:[#allocation2 + $0x70] sm:$0xff]
    %v249 = vld [vmem:[#allocation2 + $0x78] sm:$0xff]
    %v250 = vld [vmem:[#allocation2 + $0x80] sm:$0xff]
    %v251 = vld [vmem:[#allocation2 + $0x88] sm:$0xff]
    %v252 = vld [vmem:[#allocation2 + $0x90] sm:$0xff]
    %v253 = vld [vmem:[#allocation2 + $0x98] sm:$0xff]
    %v254 = vld [vmem:[#allocation2 + $0xa0] sm:$0xff]
    %v255 = vld [vmem:[#allocation2 + $0xa8] sm:$0xff]
    %v256 = vld [vmem:[#allocation2 + $0xb0] sm:$0xff]
    %v257 = vld [vmem:[#allocation2 + $0xb8] sm:$0xff]
    %v258 = vld [vmem:[#allocation2 + $0xc0] sm:$0xff]
    %v259 = vld [vmem:[#allocation2 + $0xc8] sm:$0xff]
    %v260 = vld [vmem:[#allocation2 + $0xd0] sm:$0xff]
    %v261 = vld [vmem:[#allocation2 + $0xd8] sm:$0xff]
    %v262 = vld [vmem:[#allocation2 + $0xe0] sm:$0xff]
    %v263 = vld [vmem:[#allocation2 + $0xe8] sm:$0xff]
    %v264 = vld [vmem:[#allocation2 + $0xf0] sm:$0xff]
    %v265 = vld [vmem:[#allocation2 + $0xf8] sm:$0xff]
    %v298 = vunpack.c.l.b16 %v234
    %v299 = vunpack.c.h.b16 %v234
    %v300 = vunpack.c.l.b16 %v235
    %v301 = vunpack.c.h.b16 %v235
    %v302 = vunpack.c.l.b16 %v236
    %v303 = vunpack.c.h.b16 %v236
    %v304 = vunpack.c.l.b16 %v237
    %v305 = vunpack.c.h.b16 %v237
    %v306 = vunpack.c.l.b16 %v238
    %v307 = vunpack.c.h.b16 %v238
    %v308 = vunpack.c.l.b16 %v239
    %v309 = vunpack.c.h.b16 %v239
    %v310 = vunpack.c.l.b16 %v240
    %v311 = vunpack.c.h.b16 %v240
    %v312 = vunpack.c.l.b16 %v241
    %v313 = vunpack.c.h.b16 %v241
    %v314 = vunpack.c.l.b16 %v242
    %v315 = vunpack.c.h.b16 %v242
    %v316 = vunpack.c.l.b16 %v243
    %v317 = vunpack.c.h.b16 %v243
    %v318 = vunpack.c.l.b16 %v244
    %v319 = vunpack.c.h.b16 %v244
    %v320 = vunpack.c.l.b16 %v245
    %v321 = vunpack.c.h.b16 %v245
    %v322 = vunpack.c.l.b16 %v246
    %v323 = vunpack.c.h.b16 %v246
    %v324 = vunpack.c.l.b16 %v247
    %v325 = vunpack.c.h.b16 %v247
    %v326 = vunpack.c.l.b16 %v248
    %v327 = vunpack.c.h.b16 %v248
    %v328 = vunpack.c.l.b16 %v249
    %v329 = vunpack.c.h.b16 %v249
    %v330 = vunpack.c.l.b16 %v250
    %v331 = vunpack.c.h.b16 %v250
    %v332 = vunpack.c.l.b16 %v251
    %v333 = vunpack.c.h.b16 %v251
    %v334 = vunpack.c.l.b16 %v252
    %v335 = vunpack.c.h.b16 %v252
    %v336 = vunpack.c.l.b16 %v253
    %v337 = vunpack.c.h.b16 %v253
    %v338 = vunpack.c.l.b16 %v254
    %v339 = vunpack.c.h.b16 %v254
    %v340 = vunpack.c.l.b16 %v255
    %v341 = vunpack.c.h.b16 %v255
    %v342 = vunpack.c.l.b16 %v256
    %v343 = vunpack.c.h.b16 %v256
    %v344 = vunpack.c.l.b16 %v257
    %v345 = vunpack.c.h.b16 %v257
    %v346 = vunpack.c.l.b16 %v258
    %v347 = vunpack.c.h.b16 %v258
    %v348 = vunpack.c.l.b16 %v259
    %v349 = vunpack.c.h.b16 %v259
    %v350 = vunpack.c.l.b16 %v260
    %v351 = vunpack.c.h.b16 %v260
    %v352 = vunpack.c.l.b16 %v261
    %v353 = vunpack.c.h.b16 %v261
    %v354 = vunpack.c.l.b16 %v262
    %v355 = vunpack.c.h.b16 %v262
    %v356 = vunpack.c.l.b16 %v263
    %v357 = vunpack.c.h.b16 %v263
    %v358 = vunpack.c.l.b16 %v264
    %v359 = vunpack.c.h.b16 %v264
    %v360 = vunpack.c.l.b16 %v265
    %v361 = vunpack.c.h.b16 %v265
    %v362 = vpack.c.b16 %v302, %v298
    %v363 = vpack.c.b16 %v303, %v299
    %v364 = vpack.c.b16 %v304, %v300
    %v365 = vpack.c.b16 %v305, %v301
    %v366 = vpack.c.b16 %v310, %v306
    %v367 = vpack.c.b16 %v311, %v307
    %v368 = vpack.c.b16 %v312, %v308
    %v369 = vpack.c.b16 %v313, %v309
    %v370 = vpack.c.b16 %v318, %v314
    %v371 = vpack.c.b16 %v319, %v315
    %v372 = vpack.c.b16 %v320, %v316
    %v373 = vpack.c.b16 %v321, %v317
    %v374 = vpack.c.b16 %v326, %v322
    %v375 = vpack.c.b16 %v327, %v323
    %v376 = vpack.c.b16 %v328, %v324
    %v377 = vpack.c.b16 %v329, %v325
    %v378 = vpack.c.b16 %v334, %v330
    %v379 = vpack.c.b16 %v335, %v331
    %v380 = vpack.c.b16 %v336, %v332
    %v381 = vpack.c.b16 %v337, %v333
    %v382 = vpack.c.b16 %v342, %v338
    %v383 = vpack.c.b16 %v343, %v339
    %v384 = vpack.c.b16 %v344, %v340
    %v385 = vpack.c.b16 %v345, %v341
    %v386 = vpack.c.b16 %v350, %v346
    %v387 = vpack.c.b16 %v351, %v347
    %v388 = vpack.c.b16 %v352, %v348
    %v389 = vpack.c.b16 %v353, %v349
    %v390 = vpack.c.b16 %v358, %v354
    %v391 = vpack.c.b16 %v359, %v355
    %v392 = vpack.c.b16 %v360, %v356
    %v393 = vpack.c.b16 %v361, %v357
    %426 = vmatprep.subr.bf16.mxu0 %v391
    %427 = vmatpush1.bf16.msra.mxu0 %v390
    %428 = vmatprep.subr.bf16.mxu0 %v387
    %429 = vmatpush1.bf16.msra.mxu0 %v386
    %430 = vmatprep.subr.bf16.mxu0 %v383
    %431 = vmatpush1.bf16.msra.mxu0 %v382
    %432 = vmatprep.subr.bf16.mxu0 %v379
    %433 = vmatpush1.bf16.msra.mxu0 %v378
    %434 = vmatprep.subr.bf16.mxu0 %v375
    %435 = vmatpush1.bf16.msra.mxu0 %v374
    %436 = vmatprep.subr.bf16.mxu0 %v371
    %437 = vmatpush1.bf16.msra.mxu0 %v370
    %438 = vmatprep.subr.bf16.mxu0 %v367
    %439 = vmatpush1.bf16.msra.mxu0 %v366
    %440 = vmatprep.subr.bf16.mxu0 %v363
    %441 = vmatpush1.bf16.msra.mxu0 %v362
    %442 = vmatprep.subr.bf16.mxu0 0
    %443 = vmatpush2.bf16.msra.mxu0 0
    %444 = vmatprep.subr.bf16.mxu0 0
    %445 = vmatpush2.bf16.msra.mxu0 0
    %446 = vmatprep.subr.bf16.mxu0 0
    %447 = vmatpush2.bf16.msra.mxu0 0
    %448 = vmatprep.subr.bf16.mxu0 0
    %449 = vmatpush2.bf16.msra.mxu0 0
    %450 = vmatprep.subr.bf16.mxu0 0
    %451 = vmatpush2.bf16.msra.mxu0 0
    %452 = vmatprep.subr.bf16.mxu0 0
    %453 = vmatpush2.bf16.msra.mxu0 0
    %454 = vmatprep.subr.bf16.mxu0 0
    %455 = vmatpush2.bf16.msra.mxu0 0
    %456 = vmatprep.subr.bf16.mxu0 0
    %457 = vmatpush2.bf16.msra.mxu0 0
    %458 = vmatprep.mubr.bf16.mxu0 0
    %459 = vmatmul.mubr.bf16.gmra.mxu0 0
    %v460 = vpop.f32.mrf.mxu0
    %v461 = vadd.f32 0.0, %v460
    %v462 = vpop.f32.mrf.mxu0
    %v463 = vadd.f32 0.0, %v462
    %v464 = vpop.f32.mrf.mxu0
    %v465 = vpop.f32.mrf.mxu0
    %466 = vdwg.mxu0
    %467 = vmatprep.subr.bf16.mxu0 %v393
    %468 = vmatpush1.bf16.msra.mxu0 %v392
    %469 = vmatprep.subr.bf16.mxu0 %v389
    %470 = vmatpush1.bf16.msra.mxu0 %v388
    %471 = vmatprep.subr.bf16.mxu0 %v385
    %472 = vmatpush1.bf16.msra.mxu0 %v384
    %473 = vmatprep.subr.bf16.mxu0 %v381
    %474 = vmatpush1.bf16.msra.mxu0 %v380
    %475 = vmatprep.subr.bf16.mxu0 %v377
    %476 = vmatpush1.bf16.msra.mxu0 %v376
    %477 = vmatprep.subr.bf16.mxu0 %v373
    %478 = vmatpush1.bf16.msra.mxu0 %v372
    %479 = vmatprep.subr.bf16.mxu0 %v369
    %480 = vmatpush1.bf16.msra.mxu0 %v368
    %481 = vmatprep.subr.bf16.mxu0 %v365
    %482 = vmatpush1.bf16.msra.mxu0 %v364
    %483 = vmatprep.subr.bf16.mxu0 0
    %484 = vmatpush2.bf16.msra.mxu0 0
    %485 = vmatprep.subr.bf16.mxu0 0
    %486 = vmatpush2.bf16.msra.mxu0 0
    %487 = vmatprep.subr.bf16.mxu0 0
    %488 = vmatpush2.bf16.msra.mxu0 0
    %489 = vmatprep.subr.bf16.mxu0 0
    %490 = vmatpush2.bf16.msra.mxu0 0
    %491 = vmatprep.subr.bf16.mxu0 0
    %492 = vmatpush2.bf16.msra.mxu0 0
    %493 = vmatprep.subr.bf16.mxu0 0
    %494 = vmatpush2.bf16.msra.mxu0 0
    %495 = vmatprep.subr.bf16.mxu0 0
    %496 = vmatpush2.bf16.msra.mxu0 0
    %497 = vmatprep.subr.bf16.mxu0 0
    %498 = vmatpush2.bf16.msra.mxu0 0
    %499 = vmatprep.mubr.bf16.mxu0 0
    %500 = vmatmul.mubr.bf16.gmra.mxu0 0
    %v501 = vpop.f32.mrf.mxu0
    %v502 = vadd.f32 0.0, %v501
    %v503 = vpop.f32.mrf.mxu0
    %v504 = vadd.f32 0.0, %v503
    %v505 = vpop.f32.mrf.mxu0
    %v506 = vpop.f32.mrf.mxu0
    %507 = vdwg.mxu0
    %v512 = vcombine.low %v461, %v463
    %v513 = vcombine.low %v502, %v504
    %v515 = vunpack.c.l.s4 1966171168
    %v516 = vunpack.c.0.s8 %v515
    %v517 = vlaneseq
    %v518 = vshrl.u32 %v517, 7
    %v519 = vsub.s32 %v516, %v518
    %v520 = vrot.slane %v512, %v519
    %v522 = vunpack.c.l.s4 1966171168
    %v523 = vunpack.c.0.s8 %v522
    %v524 = vlaneseq
    %v525 = vshrl.u32 %v524, 7
    %v526 = vsub.s32 %v523, %v525
    %v527 = vrot.slane %v513, %v526
    %v528 = vcombine.low %v520, %v527
    %v530 = vunpack.c.l.s4 1966171168
    %v531 = vunpack.c.0.s8 %v530
    %v532 = vlaneseq
    %v533 = vshrl.u32 %v532, 7
    %v534 = vsub.s32 %v531, %v533
    %v535 = vrot.slane %v528, %v534
    %v537 = vadd.f32 %v233, %v535
    %v538 = vmul.f32 %v537, 0.5
    %v539 = vtanh.pop %v538
    %v540 = vmul.f32 %v539, 0.5
    %v541 = vadd.f32 %v540, 0.5
    %v543 = vrot.slane %v537, 3
    %v545 = vtanh.pop %v543
    %v547 = vrot.slane %v541, 1
    %v549 = vmul.f32 %v547, 0.0
    %v550 = vmul.f32 %v541, %v545
    %v551 = vadd.f32 %v549, %v550
    %v552 = vtanh.pop %v551
    %v553 = vrot.slane %v541, 2
    %v555 = vmul.f32 %v553, %v552
    %vm556 = vcmask 1040384
    %v557 = vsel %vm556, %v555, 0.0
    %558 = vadd.xlane.f32.xlu0 %v557
    %v559 = vpop.xlane.xlu0 %558
    %v560 = vmul.f32 %v559, 0.1
    %v561 = vld [vmem:[#allocation8 + $0x40] ss:$0 sm:$0xff]
    %v562 = vmul.f32 %v560, %v561
    %v563 = vadd.f32 %v562, 0.0
    %s564 = scalar_lea.vmem [#allocation3], 1
    %v565 = vld [vmem:[%s564] ss:$8 sm:$0xf]
    %v566 = vpack.c.bf16 %v555, %v555
    %567 = vmatprep.subr.bf16.mxu0 %v391
    %568 = vmatpush1.bf16.msra.mxu0 %v390
    %569 = vmatprep.subr.bf16.mxu0 %v387
    %570 = vmatpush1.bf16.msra.mxu0 %v386
    %571 = vmatprep.subr.bf16.mxu0 %v383
    %572 = vmatpush1.bf16.msra.mxu0 %v382
    %573 = vmatprep.subr.bf16.mxu0 %v379
    %574 = vmatpush1.bf16.msra.mxu0 %v378
    %575 = vmatprep.subr.bf16.mxu0 %v375
    %576 = vmatpush1.bf16.msra.mxu0 %v374
    %577 = vmatprep.subr.bf16.mxu0 %v371
    %578 = vmatpush1.bf16.msra.mxu0 %v370
    %579 = vmatprep.subr.bf16.mxu0 %v367
    %580 = vmatpush1.bf16.msra.mxu0 %v366
    %581 = vmatprep.subr.bf16.mxu0 %v363
    %582 = vmatpush1.bf16.msra.mxu0 %v362
    %583 = vmatprep.subr.bf16.mxu0 0
    %584 = vmatpush2.bf16.msra.mxu0 0
    %585 = vmatprep.subr.bf16.mxu0 0
    %586 = vmatpush2.bf16.msra.mxu0 0
    %587 = vmatprep.subr.bf16.mxu0 0
    %588 = vmatpush2.bf16.msra.mxu0 0
    %589 = vmatprep.subr.bf16.mxu0 0
    %590 = vmatpush2.bf16.msra.mxu0 0
    %591 = vmatprep.subr.bf16.mxu0 0
    %592 = vmatpush2.bf16.msra.mxu0 0
    %593 = vmatprep.subr.bf16.mxu0 0
    %594 = vmatpush2.bf16.msra.mxu0 0
    %595 = vmatprep.subr.bf16.mxu0 0
    %596 = vmatpush2.bf16.msra.mxu0 0
    %597 = vmatprep.subr.bf16.mxu0 0
    %598 = vmatpush2.bf16.msra.mxu0 0
    %599 = vmatprep.mubr.bf16.mxu0 0
    %600 = vmatmul.mubr.bf16.gmra.mxu0 %v566
    %v601 = vpop.f32.mrf.mxu0
    %v602 = vadd.f32 0.0, %v601
    %v603 = vpop.f32.mrf.mxu0
    %v604 = vadd.f32 0.0, %v603
    %v605 = vpop.f32.mrf.mxu0
    %v606 = vpop.f32.mrf.mxu0
    %607 = vdwg.mxu0
    %608 = vmatprep.subr.bf16.mxu0 %v393
    %609 = vmatpush1.bf16.msra.mxu0 %v392
    %610 = vmatprep.subr.bf16.mxu0 %v389
    %611 = vmatpush1.bf16.msra.mxu0 %v388
    %612 = vmatprep.subr.bf16.mxu0 %v385
    %613 = vmatpush1.bf16.msra.mxu0 %v384
    %614 = vmatprep.subr.bf16.mxu0 %v381
    %615 = vmatpush1.bf16.msra.mxu0 %v380
    %616 = vmatprep.subr.bf16.mxu0 %v377
    %617 = vmatpush1.bf16.msra.mxu0 %v376
    %618 = vmatprep.subr.bf16.mxu0 %v373
    %619 = vmatpush1.bf16.msra.mxu0 %v372
    %620 = vmatprep.subr.bf16.mxu0 %v369
    %621 = vmatpush1.bf16.msra.mxu0 %v368
    %622 = vmatprep.subr.bf16.mxu0 %v365
    %623 = vmatpush1.bf16.msra.mxu0 %v364
    %624 = vmatprep.subr.bf16.mxu0 0
    %625 = vmatpush2.bf16.msra.mxu0 0
    %626 = vmatprep.subr.bf16.mxu0 0
    %627 = vmatpush2.bf16.msra.mxu0 0
    %628 = vmatprep.subr.bf16.mxu0 0
    %629 = vmatpush2.bf16.msra.mxu0 0
    %630 = vmatprep.subr.bf16.mxu0 0
    %631 = vmatpush2.bf16.msra.mxu0 0
    %632 = vmatprep.subr.bf16.mxu0 0
    %633 = vmatpush2.bf16.msra.mxu0 0
    %634 = vmatprep.subr.bf16.mxu0 0
    %635 = vmatpush2.bf16.msra.mxu0 0
    %636 = vmatprep.subr.bf16.mxu0 0
    %637 = vmatpush2.bf16.msra.mxu0 0
    %638 = vmatprep.subr.bf16.mxu0 0
    %639 = vmatpush2.bf16.msra.mxu0 0
    %640 = vmatprep.mubr.bf16.mxu0 0
    %641 = vmatmul.mubr.bf16.gmra.mxu0 %v566
    %v642 = vpop.f32.mrf.mxu0
    %v643 = vadd.f32 0.0, %v642
    %v644 = vpop.f32.mrf.mxu0
    %v645 = vadd.f32 0.0, %v644
    %v646 = vpop.f32.mrf.mxu0
    %v647 = vpop.f32.mrf.mxu0
    %648 = vdwg.mxu0
    %v653 = vcombine.low %v602, %v604
    %v654 = vcombine.low %v643, %v645
    %v656 = vunpack.c.l.s4 1966171168
    %v657 = vunpack.c.0.s8 %v656
    %v658 = vlaneseq
    %v659 = vshrl.u32 %v658, 7
    %v660 = vsub.s32 %v657, %v659
    %v661 = vrot.slane %v653, %v660
    %v663 = vunpack.c.l.s4 1966171168
    %v664 = vunpack.c.0.s8 %v663
    %v665 = vlaneseq
    %v666 = vshrl.u32 %v665, 7
    %v667 = vsub.s32 %v664, %v666
    %v668 = vrot.slane %v654, %v667
    %v669 = vcombine.low %v661, %v668
    %v671 = vunpack.c.l.s4 1966171168
    %v672 = vunpack.c.0.s8 %v671
    %v673 = vlaneseq
    %v674 = vshrl.u32 %v673, 7
    %v675 = vsub.s32 %v672, %v674
    %v676 = vrot.slane %v669, %v675
    %v678 = vadd.f32 %v565, %v676
    %v679 = vmul.f32 %v678, 0.5
    %v680 = vtanh.pop %v679
    %v681 = vmul.f32 %v680, 0.5
    %v682 = vadd.f32 %v681, 0.5
    %v684 = vrot.slane %v678, 3
    %v686 = vtanh.pop %v684
    %v688 = vrot.slane %v682, 1
    %v690 = vmul.f32 %v688, %v551
    %v691 = vmul.f32 %v682, %v686
    %v692 = vadd.f32 %v690, %v691
    %v693 = vtanh.pop %v692
    %v694 = vrot.slane %v682, 2
    %v696 = vmul.f32 %v694, %v693
    %v697 = vsel %vm556, %v696, 0.0
    %698 = vadd.xlane.f32.xlu0 %v697
    %v699 = vpop.xlane.xlu0 %698
    %v700 = vmul.f32 %v699, 0.1
    %v701 = vld [vmem:[#allocation8 + $0x41] ss:$0 sm:$0xff]
    %v702 = vmul.f32 %v700, %v701
    %v703 = vadd.f32 %v563, %v702
    %s704 = scalar_lea.vmem [#allocation3], 2
    %v705 = vld [vmem:[%s704] ss:$8 sm:$0xf]
    %v706 = vpack.c.bf16 %v696, %v696
    %707 = vmatprep.subr.bf16.mxu0 %v391
    %708 = vmatpush1.bf16.msra.mxu0 %v390
    %709 = vmatprep.subr.bf16.mxu0 %v387
    %710 = vmatpush1.bf16.msra.mxu0 %v386
    %711 = vmatprep.subr.bf16.mxu0 %v383
    %712 = vmatpush1.bf16.msra.mxu0 %v382
    %713 = vmatprep.subr.bf16.mxu0 %v379
    %714 = vmatpush1.bf16.msra.mxu0 %v378
    %715 = vmatprep.subr.bf16.mxu0 %v375
    %716 = vmatpush1.bf16.msra.mxu0 %v374
    %717 = vmatprep.subr.bf16.mxu0 %v371
    %718 = vmatpush1.bf16.msra.mxu0 %v370
    %719 = vmatprep.subr.bf16.mxu0 %v367
    %720 = vmatpush1.bf16.msra.mxu0 %v366
    %721 = vmatprep.subr.bf16.mxu0 %v363
    %722 = vmatpush1.bf16.msra.mxu0 %v362
    %723 = vmatprep.subr.bf16.mxu0 0
    %724 = vmatpush2.bf16.msra.mxu0 0
    %725 = vmatprep.subr.bf16.mxu0 0
    %726 = vmatpush2.bf16.msra.mxu0 0
    %727 = vmatprep.subr.bf16.mxu0 0
    %728 = vmatpush2.bf16.msra.mxu0 0
    %729 = vmatprep.subr.bf16.mxu0 0
    %730 = vmatpush2.bf16.msra.mxu0 0
    %731 = vmatprep.subr.bf16.mxu0 0
    %732 = vmatpush2.bf16.msra.mxu0 0
    %733 = vmatprep.subr.bf16.mxu0 0
    %734 = vmatpush2.bf16.msra.mxu0 0
    %735 = vmatprep.subr.bf16.mxu0 0
    %736 = vmatpush2.bf16.msra.mxu0 0
    %737 = vmatprep.subr.bf16.mxu0 0
    %738 = vmatpush2.bf16.msra.mxu0 0
    %739 = vmatprep.mubr.bf16.mxu0 0
    %740 = vmatmul.mubr.bf16.gmra.mxu0 %v706
    %v741 = vpop.f32.mrf.mxu0
    %v742 = vadd.f32 0.0, %v741
    %v743 = vpop.f32.mrf.mxu0
    %v744 = vadd.f32 0.0, %v743
    %v745 = vpop.f32.mrf.mxu0
    %v746 = vpop.f32.mrf.mxu0
    %747 = vdwg.mxu0
    %748 = vmatprep.subr.bf16.mxu0 %v393
    %749 = vmatpush1.bf16.msra.mxu0 %v392
    %750 = vmatprep.subr.bf16.mxu0 %v389
    %751 = vmatpush1.bf16.msra.mxu0 %v388
    %752 = vmatprep.subr.bf16.mxu0 %v385
    %753 = vmatpush1.bf16.msra.mxu0 %v384
    %754 = vmatprep.subr.bf16.mxu0 %v381
    %755 = vmatpush1.bf16.msra.mxu0 %v380
    %756 = vmatprep.subr.bf16.mxu0 %v377
    %757 = vmatpush1.bf16.msra.mxu0 %v376
    %758 = vmatprep.subr.bf16.mxu0 %v373
    %759 = vmatpush1.bf16.msra.mxu0 %v372
    %760 = vmatprep.subr.bf16.mxu0 %v369
    %761 = vmatpush1.bf16.msra.mxu0 %v368
    %762 = vmatprep.subr.bf16.mxu0 %v365
    %763 = vmatpush1.bf16.msra.mxu0 %v364
    %764 = vmatprep.subr.bf16.mxu0 0
    %765 = vmatpush2.bf16.msra.mxu0 0
    %766 = vmatprep.subr.bf16.mxu0 0
    %767 = vmatpush2.bf16.msra.mxu0 0
    %768 = vmatprep.subr.bf16.mxu0 0
    %769 = vmatpush2.bf16.msra.mxu0 0
    %770 = vmatprep.subr.bf16.mxu0 0
    %771 = vmatpush2.bf16.msra.mxu0 0
    %772 = vmatprep.subr.bf16.mxu0 0
    %773 = vmatpush2.bf16.msra.mxu0 0
    %774 = vmatprep.subr.bf16.mxu0 0
    %775 = vmatpush2.bf16.msra.mxu0 0
    %776 = vmatprep.subr.bf16.mxu0 0
    %777 = vmatpush2.bf16.msra.mxu0 0
    %778 = vmatprep.subr.bf16.mxu0 0
    %779 = vmatpush2.bf16.msra.mxu0 0
    %780 = vmatprep.mubr.bf16.mxu0 0
    %781 = vmatmul.mubr.bf16.gmra.mxu0 %v706
    %v782 = vpop.f32.mrf.mxu0
    %v783 = vadd.f32 0.0, %v782
    %v784 = vpop.f32.mrf.mxu0
    %v785 = vadd.f32 0.0, %v784
    %v786 = vpop.f32.mrf.mxu0
    %v787 = vpop.f32.mrf.mxu0
    %788 = vdwg.mxu0
    %v793 = vcombine.low %v742, %v744
    %v794 = vcombine.low %v783, %v785
    %v796 = vunpack.c.l.s4 1966171168
    %v797 = vunpack.c.0.s8 %v796
    %v798 = vlaneseq
    %v799 = vshrl.u32 %v798, 7
    %v800 = vsub.s32 %v797, %v799
    %v801 = vrot.slane %v793, %v800
    %v803 = vunpack.c.l.s4 1966171168
    %v804 = vunpack.c.0.s8 %v803
    %v805 = vlaneseq
    %v806 = vshrl.u32 %v805, 7
    %v807 = vsub.s32 %v804, %v806
    %v808 = vrot.slane %v794, %v807
    %v809 = vcombine.low %v801, %v808
    %v811 = vunpack.c.l.s4 1966171168
    %v812 = vunpack.c.0.s8 %v811
    %v813 = vlaneseq
    %v814 = vshrl.u32 %v813, 7
    %v815 = vsub.s32 %v812, %v814
    %v816 = vrot.slane %v809, %v815
    %v818 = vadd.f32 %v705, %v816
    %v819 = vmul.f32 %v818, 0.5
    %v820 = vtanh.pop %v819
    %v821 = vmul.f32 %v820, 0.5
    %v822 = vadd.f32 %v821, 0.5
    %v824 = vrot.slane %v818, 3
    %v826 = vtanh.pop %v824
    %v828 = vrot.slane %v822, 1
    %v830 = vmul.f32 %v828, %v692
    %v831 = vmul.f32 %v822, %v826
    %v832 = vadd.f32 %v830, %v831
    %v833 = vtanh.pop %v832
    %v834 = vrot.slane %v822, 2
    %v836 = vmul.f32 %v834, %v833
    %v837 = vsel %vm556, %v836, 0.0
    %838 = vadd.xlane.f32.xlu0 %v837
    %v839 = vpop.xlane.xlu0 %838
    %v840 = vmul.f32 %v839, 0.1
    %v841 = vld [vmem:[#allocation8 + $0x42] ss:$0 sm:$0xff]
    %v842 = vmul.f32 %v840, %v841
    %v843 = vadd.f32 %v703, %v842
    %s844 = scalar_lea.vmem [#allocation3], 3
    %v845 = vld [vmem:[%s844] ss:$8 sm:$0xf]
    %v846 = vpack.c.bf16 %v836, %v836
    %847 = vmatprep.subr.bf16.mxu0 %v391
    %848 = vmatpush1.bf16.msra.mxu0 %v390
    %849 = vmatprep.subr.bf16.mxu0 %v387
    %850 = vmatpush1.bf16.msra.mxu0 %v386
    %851 = vmatprep.subr.bf16.mxu0 %v383
    %852 = vmatpush1.bf16.msra.mxu0 %v382
    %853 = vmatprep.subr.bf16.mxu0 %v379
    %854 = vmatpush1.bf16.msra.mxu0 %v378
    %855 = vmatprep.subr.bf16.mxu0 %v375
    %856 = vmatpush1.bf16.msra.mxu0 %v374
    %857 = vmatprep.subr.bf16.mxu0 %v371
    %858 = vmatpush1.bf16.msra.mxu0 %v370
    %859 = vmatprep.subr.bf16.mxu0 %v367
    %860 = vmatpush1.bf16.msra.mxu0 %v366
    %861 = vmatprep.subr.bf16.mxu0 %v363
    %862 = vmatpush1.bf16.msra.mxu0 %v362
    %863 = vmatprep.subr.bf16.mxu0 0
    %864 = vmatpush2.bf16.msra.mxu0 0
    %865 = vmatprep.subr.bf16.mxu0 0
    %866 = vmatpush2.bf16.msra.mxu0 0
    %867 = vmatprep.subr.bf16.mxu0 0
    %868 = vmatpush2.bf16.msra.mxu0 0
    %869 = vmatprep.subr.bf16.mxu0 0
    %870 = vmatpush2.bf16.msra.mxu0 0
    %871 = vmatprep.subr.bf16.mxu0 0
    %872 = vmatpush2.bf16.msra.mxu0 0
    %873 = vmatprep.subr.bf16.mxu0 0
    %874 = vmatpush2.bf16.msra.mxu0 0
    %875 = vmatprep.subr.bf16.mxu0 0
    %876 = vmatpush2.bf16.msra.mxu0 0
    %877 = vmatprep.subr.bf16.mxu0 0
    %878 = vmatpush2.bf16.msra.mxu0 0
    %879 = vmatprep.mubr.bf16.mxu0 0
    %880 = vmatmul.mubr.bf16.gmra.mxu0 %v846
    %v881 = vpop.f32.mrf.mxu0
    %v882 = vadd.f32 0.0, %v881
    %v883 = vpop.f32.mrf.mxu0
    %v884 = vadd.f32 0.0, %v883
    %v885 = vpop.f32.mrf.mxu0
    %v886 = vpop.f32.mrf.mxu0
    %887 = vdwg.mxu0
    %888 = vmatprep.subr.bf16.mxu0 %v393
    %889 = vmatpush1.bf16.msra.mxu0 %v392
    %890 = vmatprep.subr.bf16.mxu0 %v389
    %891 = vmatpush1.bf16.msra.mxu0 %v388
    %892 = vmatprep.subr.bf16.mxu0 %v385
    %893 = vmatpush1.bf16.msra.mxu0 %v384
    %894 = vmatprep.subr.bf16.mxu0 %v381
    %895 = vmatpush1.bf16.msra.mxu0 %v380
    %896 = vmatprep.subr.bf16.mxu0 %v377
    %897 = vmatpush1.bf16.msra.mxu0 %v376
    %898 = vmatprep.subr.bf16.mxu0 %v373
    %899 = vmatpush1.bf16.msra.mxu0 %v372
    %900 = vmatprep.subr.bf16.mxu0 %v369
    %901 = vmatpush1.bf16.msra.mxu0 %v368
    %902 = vmatprep.subr.bf16.mxu0 %v365
    %903 = vmatpush1.bf16.msra.mxu0 %v364
    %904 = vmatprep.subr.bf16.mxu0 0
    %905 = vmatpush2.bf16.msra.mxu0 0
    %906 = vmatprep.subr.bf16.mxu0 0
    %907 = vmatpush2.bf16.msra.mxu0 0
    %908 = vmatprep.subr.bf16.mxu0 0
    %909 = vmatpush2.bf16.msra.mxu0 0
    %910 = vmatprep.subr.bf16.mxu0 0
    %911 = vmatpush2.bf16.msra.mxu0 0
    %912 = vmatprep.subr.bf16.mxu0 0
    %913 = vmatpush2.bf16.msra.mxu0 0
    %914 = vmatprep.subr.bf16.mxu0 0
    %915 = vmatpush2.bf16.msra.mxu0 0
    %916 = vmatprep.subr.bf16.mxu0 0
    %917 = vmatpush2.bf16.msra.mxu0 0
    %918 = vmatprep.subr.bf16.mxu0 0
    %919 = vmatpush2.bf16.msra.mxu0 0
    %920 = vmatprep.mubr.bf16.mxu0 0
    %921 = vmatmul.mubr.bf16.gmra.mxu0 %v846
    %v922 = vpop.f32.mrf.mxu0
    %v923 = vadd.f32 0.0, %v922
    %v924 = vpop.f32.mrf.mxu0
    %v925 = vadd.f32 0.0, %v924
    %v926 = vpop.f32.mrf.mxu0
    %v927 = vpop.f32.mrf.mxu0
    %928 = vdwg.mxu0
    %v933 = vcombine.low %v882, %v884
    %v934 = vcombine.low %v923, %v925
    %v936 = vunpack.c.l.s4 1966171168
    %v937 = vunpack.c.0.s8 %v936
    %v938 = vlaneseq
    %v939 = vshrl.u32 %v938, 7
    %v940 = vsub.s32 %v937, %v939
    %v941 = vrot.slane %v933, %v940
    %v943 = vunpack.c.l.s4 1966171168
    %v944 = vunpack.c.0.s8 %v943
    %v945 = vlaneseq
    %v946 = vshrl.u32 %v945, 7
    %v947 = vsub.s32 %v944, %v946
    %v948 = vrot.slane %v934, %v947
    %v949 = vcombine.low %v941, %v948
    %v951 = vunpack.c.l.s4 1966171168
    %v952 = vunpack.c.0.s8 %v951
    %v953 = vlaneseq
    %v954 = vshrl.u32 %v953, 7
    %v955 = vsub.s32 %v952, %v954
    %v956 = vrot.slane %v949, %v955
    %v958 = vadd.f32 %v845, %v956
    %v959 = vmul.f32 %v958, 0.5
    %v960 = vtanh.pop %v959
    %v961 = vmul.f32 %v960, 0.5
    %v962 = vadd.f32 %v961, 0.5
    %v964 = vrot.slane %v958, 3
    %v966 = vtanh.pop %v964
    %v968 = vrot.slane %v962, 1
    %v970 = vmul.f32 %v968, %v832
    %v971 = vmul.f32 %v962, %v966
    %v972 = vadd.f32 %v970, %v971
    %v973 = vtanh.pop %v972
    %v974 = vrot.slane %v962, 2
    %v976 = vmul.f32 %v974, %v973
    %v977 = vsel %vm556, %v976, 0.0
    %978 = vadd.xlane.f32.xlu0 %v977
    %v979 = vpop.xlane.xlu0 %978
    %v980 = vmul.f32 %v979, 0.1
    %v981 = vld [vmem:[#allocation8 + $0x43] ss:$0 sm:$0xff]
    %v982 = vmul.f32 %v980, %v981
    %v983 = vadd.f32 %v843, %v982
    %s984 = scalar_lea.vmem [#allocation3], 4
    %v985 = vld [vmem:[%s984] ss:$8 sm:$0xf]
    %v986 = vpack.c.bf16 %v976, %v976
    %987 = vmatprep.subr.bf16.mxu0 %v391
    %988 = vmatpush1.bf16.msra.mxu0 %v390
    %989 = vmatprep.subr.bf16.mxu0 %v387
    %990 = vmatpush1.bf16.msra.mxu0 %v386
    %991 = vmatprep.subr.bf16.mxu0 %v383
    %992 = vmatpush1.bf16.msra.mxu0 %v382
    %993 = vmatprep.subr.bf16.mxu0 %v379
    %994 = vmatpush1.bf16.msra.mxu0 %v378
    %995 = vmatprep.subr.bf16.mxu0 %v375
    %996 = vmatpush1.bf16.msra.mxu0 %v374
    %997 = vmatprep.subr.bf16.mxu0 %v371
    %998 = vmatpush1.bf16.msra.mxu0 %v370
    %999 = vmatprep.subr.bf16.mxu0 %v367
    %1000 = vmatpush1.bf16.msra.mxu0 %v366
    %1001 = vmatprep.subr.bf16.mxu0 %v363
    %1002 = vmatpush1.bf16.msra.mxu0 %v362
    %1003 = vmatprep.subr.bf16.mxu0 0
    %1004 = vmatpush2.bf16.msra.mxu0 0
    %1005 = vmatprep.subr.bf16.mxu0 0
    %1006 = vmatpush2.bf16.msra.mxu0 0
    %1007 = vmatprep.subr.bf16.mxu0 0
    %1008 = vmatpush2.bf16.msra.mxu0 0
    %1009 = vmatprep.subr.bf16.mxu0 0
    %1010 = vmatpush2.bf16.msra.mxu0 0
    %1011 = vmatprep.subr.bf16.mxu0 0
    %1012 = vmatpush2.bf16.msra.mxu0 0
    %1013 = vmatprep.subr.bf16.mxu0 0
    %1014 = vmatpush2.bf16.msra.mxu0 0
    %1015 = vmatprep.subr.bf16.mxu0 0
    %1016 = vmatpush2.bf16.msra.mxu0 0
    %1017 = vmatprep.subr.bf16.mxu0 0
    %1018 = vmatpush2.bf16.msra.mxu0 0
    %1019 = vmatprep.mubr.bf16.mxu0 0
    %1020 = vmatmul.mubr.bf16.gmra.mxu0 %v986
    %v1021 = vpop.f32.mrf.mxu0
    %v1022 = vadd.f32 0.0, %v1021
    %v1023 = vpop.f32.mrf.mxu0
    %v1024 = vadd.f32 0.0, %v1023
    %v1025 = vpop.f32.mrf.mxu0
    %v1026 = vpop.f32.mrf.mxu0
    %1027 = vdwg.mxu0
    %1028 = vmatprep.subr.bf16.mxu0 %v393
    %1029 = vmatpush1.bf16.msra.mxu0 %v392
    %1030 = vmatprep.subr.bf16.mxu0 %v389
    %1031 = vmatpush1.bf16.msra.mxu0 %v388
    %1032 = vmatprep.subr.bf16.mxu0 %v385
    %1033 = vmatpush1.bf16.msra.mxu0 %v384
    %1034 = vmatprep.subr.bf16.mxu0 %v381
    %1035 = vmatpush1.bf16.msra.mxu0 %v380
    %1036 = vmatprep.subr.bf16.mxu0 %v377
    %1037 = vmatpush1.bf16.msra.mxu0 %v376
    %1038 = vmatprep.subr.bf16.mxu0 %v373
    %1039 = vmatpush1.bf16.msra.mxu0 %v372
    %1040 = vmatprep.subr.bf16.mxu0 %v369
    %1041 = vmatpush1.bf16.msra.mxu0 %v368
    %1042 = vmatprep.subr.bf16.mxu0 %v365
    %1043 = vmatpush1.bf16.msra.mxu0 %v364
    %1044 = vmatprep.subr.bf16.mxu0 0
    %1045 = vmatpush2.bf16.msra.mxu0 0
    %1046 = vmatprep.subr.bf16.mxu0 0
    %1047 = vmatpush2.bf16.msra.mxu0 0
    %1048 = vmatprep.subr.bf16.mxu0 0
    %1049 = vmatpush2.bf16.msra.mxu0 0
    %1050 = vmatprep.subr.bf16.mxu0 0
    %1051 = vmatpush2.bf16.msra.mxu0 0
    %1052 = vmatprep.subr.bf16.mxu0 0
    %1053 = vmatpush2.bf16.msra.mxu0 0
    %1054 = vmatprep.subr.bf16.mxu0 0
    %1055 = vmatpush2.bf16.msra.mxu0 0
    %1056 = vmatprep.subr.bf16.mxu0 0
    %1057 = vmatpush2.bf16.msra.mxu0 0
    %1058 = vmatprep.subr.bf16.mxu0 0
    %1059 = vmatpush2.bf16.msra.mxu0 0
    %1060 = vmatprep.mubr.bf16.mxu0 0
    %1061 = vmatmul.mubr.bf16.gmra.mxu0 %v986
    %v1062 = vpop.f32.mrf.mxu0
    %v1063 = vadd.f32 0.0, %v1062
    %v1064 = vpop.f32.mrf.mxu0
    %v1065 = vadd.f32 0.0, %v1064
    %v1066 = vpop.f32.mrf.mxu0
    %v1067 = vpop.f32.mrf.mxu0
    %1068 = vdwg.mxu0
    %v1073 = vcombine.low %v1022, %v1024
    %v1074 = vcombine.low %v1063, %v1065
    %v1076 = vunpack.c.l.s4 1966171168
    %v1077 = vunpack.c.0.s8 %v1076
    %v1078 = vlaneseq
    %v1079 = vshrl.u32 %v1078, 7
    %v1080 = vsub.s32 %v1077, %v1079
    %v1081 = vrot.slane %v1073, %v1080
    %v1083 = vunpack.c.l.s4 1966171168
    %v1084 = vunpack.c.0.s8 %v1083
    %v1085 = vlaneseq
    %v1086 = vshrl.u32 %v1085, 7
    %v1087 = vsub.s32 %v1084, %v1086
    %v1088 = vrot.slane %v1074, %v1087
    %v1089 = vcombine.low %v1081, %v1088
    %v1091 = vunpack.c.l.s4 1966171168
    %v1092 = vunpack.c.0.s8 %v1091
    %v1093 = vlaneseq
    %v1094 = vshrl.u32 %v1093, 7
    %v1095 = vsub.s32 %v1092, %v1094
    %v1096 = vrot.slane %v1089, %v1095
    %v1098 = vadd.f32 %v985, %v1096
    %v1099 = vmul.f32 %v1098, 0.5
    %v1100 = vtanh.pop %v1099
    %v1101 = vmul.f32 %v1100, 0.5
    %v1102 = vadd.f32 %v1101, 0.5
    %v1104 = vrot.slane %v1098, 3
    %v1106 = vtanh.pop %v1104
    %v1108 = vrot.slane %v1102, 1
    %v1110 = vmul.f32 %v1108, %v972
    %v1111 = vmul.f32 %v1102, %v1106
    %v1112 = vadd.f32 %v1110, %v1111
    %v1113 = vtanh.pop %v1112
    %v1114 = vrot.slane %v1102, 2
    %v1116 = vmul.f32 %v1114, %v1113
    %v1117 = vsel %vm556, %v1116, 0.0
    %1118 = vadd.xlane.f32.xlu0 %v1117
    %v1119 = vpop.xlane.xlu0 %1118
    %v1120 = vmul.f32 %v1119, 0.1
    %v1121 = vld [vmem:[#allocation8 + $0x44] ss:$0 sm:$0xff]
    %v1122 = vmul.f32 %v1120, %v1121
    %v1123 = vadd.f32 %v983, %v1122
    %v1124 = vld [vmem:[#allocation8 + $0x60] ss:$0 sm:$0xff]
    %v1125 = vadd.f32 %v1123, %v1124
    %v1126 = vmul.f32 %v1125, 0.5
    %v1127 = vtanh.pop %v1126
    %v1128 = vmul.f32 %v1127, 0.5
    %v1129 = vadd.f32 %v1128, 0.5
    %1130 = vst [vmem:[#allocation10] sm:$0x1] %v1129
    // Predicated region
    $region22: #{tpu_custom_call.1} parent=1 // pred_check
      _
    $region23: #{tpu_custom_call.1} parent=1 // pred_check_branch
      %1132 = sbr.rel (0) target = $region25
    $region24: #{tpu_custom_call.1} parent=1 // pred_region
      %s1134 = ssub.s32 16, 16
      %1135 = vsyncadd [#allocation7], %s1134
      %s1137 = sshll.u32 [#allocation10], 4
      %s1138 = int_to_ptr.vmem [resolvable:$true] %s1137
      %1140 = dma.vmem_to_hbm [thread:$0]  %s1138, 16, %s3, [#allocation7]
    $region25: #{tpu_custom_call.1} parent=1 // pred_fallthru
      _
    // Predicated region
    $region26: #{tpu_custom_call.1} parent=1 // pred_check
      _
    $region27: #{tpu_custom_call.1} parent=1 // pred_check_branch
      %1142 = sbr.rel (0) target = $region29
    $region28: #{tpu_custom_call.1} parent=1 // pred_region
      %1143 = dma.done [#allocation7], 16
    $region29: #{tpu_custom_call.1} parent=1 // pred_fallthru
      _
    %1144 = vsyncpa [#allocation6], 1
    %1145 = vsyncpa [#allocation9], 1
    %1146 = vsyncpa [#allocation7], 1
  %1147 = vsyncmov [#allocation4]
  %s1148 = vpop.sfrf %1147
  %p1149 = scmp.eq.s32.totalorder %s1148, 0
  %p1150 = pneg %p1149
  %1152 = shalt.err (%p1150)

</llo_original>
